<compile_context>
chip_gen: v7x
topology: tpu7x:2x2x1
jax: 0.10.0
libtpu: 0.0.40
codegen_flags: <defaults>
</compile_context>

<pallas_src>
import math
from functools import partial

import jax
import jax.numpy as jnp
from jax import lax
from jax.experimental import pallas as pl
from jax.experimental.pallas import tpu as pltpu


def _attention_layer_kernel(x_ref, wqkv_ref, bq_ref, wo_ref, bo_ref, out_ref,
                            o_scratch, *, n_heads, d_keys, d_values):
    Hdk = n_heads * d_keys

    x = x_ref[0]                                                    # (L, D) bf16

    # --- fused Q/K/V projection for ALL heads: one lane-dense MXU matmul ---
    qkv = jnp.dot(x, wqkv_ref[...],
                  preferred_element_type=jnp.float32)               # (L, 2Hdk+Hdv) f32

    # scale + bq folded into wqkv/bq host-side; bk dropped (softmax is
    # shift-invariant along the key axis); bv folded into bo host-side.
    q = (qkv[:, :Hdk] + bq_ref[...]).astype(jnp.bfloat16)           # (L, Hdk)
    k = qkv[:, Hdk:2 * Hdk].astype(jnp.bfloat16)                    # (L, Hdk)
    v = qkv[:, 2 * Hdk:].astype(jnp.bfloat16)                       # (L, Hdv)

    # --- per-head attention: static loop, H is a compile-time constant ---
    for h in range(n_heads):
        qh = q[:, h * d_keys:(h + 1) * d_keys]
        kh = k[:, h * d_keys:(h + 1) * d_keys]
        vh = v[:, h * d_values:(h + 1) * d_values]

        # scores = Qh @ Kh^T without an explicit transpose (contract last dims).
        s = lax.dot_general(qh, kh, dimension_numbers=(((1,), (1,)), ((), ())),
                            preferred_element_type=jnp.float32)     # (L, L) f32

        # Numerically stable softmax in f32; reciprocal on the EUP slot.
        s = s - jnp.max(s, axis=-1, keepdims=True)
        p = jnp.exp(s)
        p = p * pl.reciprocal(jnp.sum(p, axis=-1, keepdims=True), approx=True)

        oh = jnp.dot(p.astype(jnp.bfloat16), vh,
                     preferred_element_type=jnp.float32)            # (L, dv)
        o_scratch[:, h * d_values:(h + 1) * d_values] = oh.astype(jnp.bfloat16)

    # --- single big-K output projection over the whole head slab ---
    out = jnp.dot(o_scratch[...], wo_ref[...],
                  preferred_element_type=jnp.float32) + bo_ref[...]
    out_ref[0] = out.astype(out_ref.dtype)


def attention_layer(x, params, *, n_heads, d_keys, d_values, scale=None):
    """x: (N, L, d_model) float32. params: dict of (in, out) weights + biases."""
    N, L, D = x.shape
    scale_val = scale if scale is not None else 1.0 / math.sqrt(d_keys)
    Hdk, Hdv = n_heads * d_keys, n_heads * d_values

    # --- one-time host-side parameter re-layout + exact algebraic folds ---
    wq = params["wq"].astype(jnp.float32) * scale_val               # scale -> Wq
    bq = params["bq"].reshape(1, Hdk).astype(jnp.float32) * scale_val
    wk = params["wk"].astype(jnp.float32)                           # bk dropped
    wv = params["wv"].astype(jnp.float32)                           # bv folded into bo
    wo = params["wo"].astype(jnp.float32)
    bv = params["bv"].reshape(1, Hdv).astype(jnp.float32)
    bo = params["bo"].reshape(1, D).astype(jnp.float32) + bv @ wo   # exact fold

    wqkv = jnp.concatenate([wq, wk, wv], axis=1).astype(jnp.bfloat16)  # (D, 2Hdk+Hdv)
    wo_bf = wo.astype(jnp.bfloat16)
    x_bf = x.astype(jnp.bfloat16)                                   # cast once, half DMA

    kernel = partial(_attention_layer_kernel, n_heads=n_heads,
                     d_keys=d_keys, d_values=d_values)

    qkv_cols = 2 * Hdk + Hdv
    # Explicit VMEM budget with 2x headroom (v5e scoped default is 16 MiB).
    vmem_bytes = (2 * L * D * 2                       # x bf16, double-buffered
                  + 2 * L * D * 4                     # out f32, double-buffered
                  + D * qkv_cols * 2 + Hdv * D * 2    # resident weights (bf16)
                  + (Hdk + D) * 4                     # biases
                  + L * Hdv * 2                       # head-output slab scratch
                  + L * qkv_cols * 4                  # fused projection result
                  + 4 * L * L * 4)                    # softmax temporaries
    vmem_limit = int(min(max(2 * vmem_bytes, 4 << 20), 96 << 20))

    return pl.pallas_call(
        kernel,
        out_shape=jax.ShapeDtypeStruct((N, L, D), x.dtype),
        grid=(N,),
        in_specs=[
            pl.BlockSpec((1, L, D), lambda n: (n, 0, 0)),           # x (bf16)
            pl.BlockSpec((D, qkv_cols), lambda n: (0, 0)),          # fused W_qkv (resident)
            pl.BlockSpec((1, Hdk), lambda n: (0, 0)),               # bq (pre-scaled)
            pl.BlockSpec((Hdv, D), lambda n: (0, 0)),               # W_o (resident)
            pl.BlockSpec((1, D), lambda n: (0, 0)),                 # bo (+ bv @ W_o)
        ],
        out_specs=pl.BlockSpec((1, L, D), lambda n: (n, 0, 0)),
        scratch_shapes=[pltpu.VMEM((L, Hdv), jnp.bfloat16)],        # head-output slab
        compiler_params=pltpu.CompilerParams(
            dimension_semantics=("parallel",),
            vmem_limit_bytes=vmem_limit),
    )(x_bf, wqkv, bq, wo_bf, bo)


def init_params(key, d_model, n_heads, d_keys, d_values):
    """Deterministic parameter init. PyTorch Linear stores (out, in); we
    pre-transpose to (in, out) so y = x @ W + b."""
    ks = jax.random.split(key, 8)

    def lin(kw, kb, in_dim, out_dim):
        bound = 1.0 / math.sqrt(in_dim)
        w = jax.random.uniform(kw, (out_dim, in_dim), jnp.float32, -bound, bound)
        b = jax.random.uniform(kb, (out_dim,), jnp.float32, -bound, bound)
        return w.T, b.reshape(1, out_dim)   # (in, out), (1, out)

    wq, bq = lin(ks[0], ks[1], d_model, n_heads * d_keys)
    wk, bk = lin(ks[2], ks[3], d_model, n_heads * d_keys)
    wv, bv = lin(ks[4], ks[5], d_model, n_heads * d_values)
    wo, bo = lin(ks[6], ks[7], n_heads * d_values, d_model)
    return dict(wq=wq, bq=bq, wk=wk, bk=bk, wv=wv, bv=bv, wo=wo, bo=bo)


def reference_attention_layer(x, params, *, n_heads, d_keys, d_values, scale=None):
    """Pure-JAX f32 reference mirroring the PyTorch forward."""
    N, L, D = x.shape
    scale_val = scale if scale is not None else 1.0 / math.sqrt(d_keys)
    q = (x @ params["wq"] + params["bq"]).reshape(N, L, n_heads, d_keys)
    k = (x @ params["wk"] + params["bk"]).reshape(N, L, n_heads, d_keys)
    v = (x @ params["wv"] + params["bv"]).reshape(N, L, n_heads, d_values)
    s = jnp.einsum("nlhd,nshd->nhls", q, k) * scale_val
    a = jax.nn.softmax(s, axis=-1)
    o = jnp.einsum("nhls,nshd->nlhd", a, v).reshape(N, L, n_heads * d_values)
    return o @ params["wo"] + params["bo"]


if __name__ == "__main__":
    N, L, d_model, n_heads = 2, 8, 32, 4
    d_keys = d_model // n_heads
    d_values = d_model // n_heads

    key = jax.random.PRNGKey(0)
    kx, kp = jax.random.split(key)
    x = jax.random.normal(kx, (N, L, d_model), jnp.float32)
    params = init_params(kp, d_model, n_heads, d_keys, d_values)

    out = attention_layer(x, params, n_heads=n_heads,
                          d_keys=d_keys, d_values=d_values)
    out = jax.block_until_ready(out)

    ref = reference_attention_layer(x, params, n_heads=n_heads,
                                    d_keys=d_keys, d_values=d_values)
    assert out.shape == (N, L, d_model)
    # bf16 MXU matmuls (f32 accumulation) + approx reciprocal -> relaxed tolerance.
    assert jnp.allclose(out, ref, atol=5e-2, rtol=5e-2), \
        f"max abs err {jnp.max(jnp.abs(out - ref))}"

    print("KERNEL_OK")
</pallas_src>

<mosaic_0001>
module attributes {stable_mosaic.version = 11 : i64} {
  func.func @_attention_layer_kernel(%arg0: i32, %arg1: memref<1x8x32xbf16, #tpu.memory_space<vmem>>, %arg2: memref<32x96xbf16, #tpu.memory_space<vmem>>, %arg3: memref<1x32xf32, #tpu.memory_space<vmem>>, %arg4: memref<32x32xbf16, #tpu.memory_space<vmem>>, %arg5: memref<1x32xf32, #tpu.memory_space<vmem>>, %arg6: memref<1x8x32xf32, #tpu.memory_space<vmem>>, %arg7: memref<8x32xbf16, #tpu.memory_space<vmem>>) attributes {dimension_semantics = [#tpu.dimension_semantics<parallel>], iteration_bounds = array<i64: 2>, scalar_prefetch = 0 : i64, scratch_operands = 1 : i64, tpu.core_type = #tpu.core_type<tc>, window_params = [{transform_indices = @transform_0, window_bounds = array<i64: 1, 8, 32>}, {pipeline_mode = #tpu.pipeline_mode<synchronous>, transform_indices = @transform_1, window_bounds = array<i64: 32, 96>}, {pipeline_mode = #tpu.pipeline_mode<synchronous>, transform_indices = @transform_2, window_bounds = array<i64: 1, 32>}, {pipeline_mode = #tpu.pipeline_mode<synchronous>, transform_indices = @transform_3, window_bounds = array<i64: 32, 32>}, {pipeline_mode = #tpu.pipeline_mode<synchronous>, transform_indices = @transform_4, window_bounds = array<i64: 1, 32>}, {transform_indices = @transform_5, window_bounds = array<i64: 1, 8, 32>}]} {
    %c0 = arith.constant 0 : index
    %c0_0 = arith.constant 0 : index
    %c0_1 = arith.constant 0 : index
    %0 = vector.load %arg1[%c0, %c0_0, %c0_1] : memref<1x8x32xbf16, #tpu.memory_space<vmem>>, vector<1x8x32xbf16>
    %1 = vector.shape_cast %0 : vector<1x8x32xbf16> to vector<8x32xbf16>
    %c0_2 = arith.constant 0 : index
    %c0_3 = arith.constant 0 : index
    %2 = vector.load %arg2[%c0_2, %c0_3] : memref<32x96xbf16, #tpu.memory_space<vmem>>, vector<32x96xbf16>
    %cst = arith.constant dense<0.000000e+00> : vector<8x96xf32>
    %3 = tpu.matmul %1, %2, %cst {dimension_numbers = #tpu.dot_dimension_numbers<[1], [0], [0], [1], [0, 0, 1, 1], [], []>} : vector<8x32xbf16>, vector<32x96xbf16>, vector<8x96xf32> -> vector<8x96xf32>
    %4 = vector.extract_strided_slice %3 {offsets = [0, 0], sizes = [8, 32], strides = [1, 1]} : vector<8x96xf32> to vector<8x32xf32>
    %c0_4 = arith.constant 0 : index
    %c0_5 = arith.constant 0 : index
    %5 = vector.load %arg3[%c0_4, %c0_5] : memref<1x32xf32, #tpu.memory_space<vmem>>, vector<1x32xf32>
    %6 = vector.broadcast %5 : vector<1x32xf32> to vector<8x32xf32>
    %7 = arith.addf %4, %6 : vector<8x32xf32>
    %8 = arith.truncf %7 : vector<8x32xf32> to vector<8x32xbf16>
    %9 = vector.extract_strided_slice %3 {offsets = [0, 32], sizes = [8, 32], strides = [1, 1]} : vector<8x96xf32> to vector<8x32xf32>
    %10 = arith.truncf %9 : vector<8x32xf32> to vector<8x32xbf16>
    %11 = vector.extract_strided_slice %3 {offsets = [0, 64], sizes = [8, 32], strides = [1, 1]} : vector<8x96xf32> to vector<8x32xf32>
    %12 = arith.truncf %11 : vector<8x32xf32> to vector<8x32xbf16>
    %13 = vector.extract_strided_slice %8 {offsets = [0, 0], sizes = [8, 8], strides = [1, 1]} : vector<8x32xbf16> to vector<8x8xbf16>
    %14 = vector.extract_strided_slice %10 {offsets = [0, 0], sizes = [8, 8], strides = [1, 1]} : vector<8x32xbf16> to vector<8x8xbf16>
    %15 = vector.extract_strided_slice %12 {offsets = [0, 0], sizes = [8, 8], strides = [1, 1]} : vector<8x32xbf16> to vector<8x8xbf16>
    %cst_6 = arith.constant dense<0.000000e+00> : vector<8x8xf32>
    %16 = tpu.matmul %13, %14, %cst_6 {dimension_numbers = #tpu.dot_dimension_numbers<[1], [1], [0], [0], [0, 0, 1, 0], [], []>} : vector<8x8xbf16>, vector<8x8xbf16>, vector<8x8xf32> -> vector<8x8xf32>
    %cst_7 = arith.constant dense<0xFF800000> : vector<8xf32>
    %17 = vector.multi_reduction <maximumf>, %16, %cst_7 [1] : vector<8x8xf32> to vector<8xf32>
    %18 = vector.shape_cast %17 : vector<8xf32> to vector<8x1xf32>
    %19 = vector.broadcast %18 : vector<8x1xf32> to vector<8x8xf32>
    %20 = arith.subf %16, %19 : vector<8x8xf32>
    %21 = math.exp %20 : vector<8x8xf32>
    %cst_8 = arith.constant dense<0.000000e+00> : vector<8xf32>
    %22 = vector.multi_reduction <add>, %21, %cst_8 [1] : vector<8x8xf32> to vector<8xf32>
    %23 = vector.shape_cast %22 : vector<8xf32> to vector<8x1xf32>
    %24 = tpu.reciprocal %23 {approx = true} : vector<8x1xf32> -> vector<8x1xf32>
    %25 = vector.broadcast %24 : vector<8x1xf32> to vector<8x8xf32>
    %26 = arith.mulf %21, %25 : vector<8x8xf32>
    %27 = arith.truncf %26 : vector<8x8xf32> to vector<8x8xbf16>
    %cst_9 = arith.constant dense<0.000000e+00> : vector<8x8xf32>
    %28 = tpu.matmul %27, %15, %cst_9 {dimension_numbers = #tpu.dot_dimension_numbers<[1], [0], [0], [1], [0, 0, 1, 1], [], []>} : vector<8x8xbf16>, vector<8x8xbf16>, vector<8x8xf32> -> vector<8x8xf32>
    %29 = arith.truncf %28 : vector<8x8xf32> to vector<8x8xbf16>
    %c0_10 = arith.constant 0 : index
    %c0_11 = arith.constant 0 : index
    %30 = vector.load %arg7[%c0_10, %c0_11] : memref<8x32xbf16, #tpu.memory_space<vmem>>, vector<8x8xbf16>
    tpu.vector_store %arg7[%c0_10, %c0_11], %29 {strides = array<i32>} : memref<8x32xbf16, #tpu.memory_space<vmem>>, vector<8x8xbf16>,
    %31 = vector.extract_strided_slice %8 {offsets = [0, 8], sizes = [8, 8], strides = [1, 1]} : vector<8x32xbf16> to vector<8x8xbf16>
    %32 = vector.extract_strided_slice %10 {offsets = [0, 8], sizes = [8, 8], strides = [1, 1]} : vector<8x32xbf16> to vector<8x8xbf16>
    %33 = vector.extract_strided_slice %12 {offsets = [0, 8], sizes = [8, 8], strides = [1, 1]} : vector<8x32xbf16> to vector<8x8xbf16>
    %cst_12 = arith.constant dense<0.000000e+00> : vector<8x8xf32>
    %34 = tpu.matmul %31, %32, %cst_12 {dimension_numbers = #tpu.dot_dimension_numbers<[1], [1], [0], [0], [0, 0, 1, 0], [], []>} : vector<8x8xbf16>, vector<8x8xbf16>, vector<8x8xf32> -> vector<8x8xf32>
    %cst_13 = arith.constant dense<0xFF800000> : vector<8xf32>
    %35 = vector.multi_reduction <maximumf>, %34, %cst_13 [1] : vector<8x8xf32> to vector<8xf32>
    %36 = vector.shape_cast %35 : vector<8xf32> to vector<8x1xf32>
    %37 = vector.broadcast %36 : vector<8x1xf32> to vector<8x8xf32>
    %38 = arith.subf %34, %37 : vector<8x8xf32>
    %39 = math.exp %38 : vector<8x8xf32>
    %cst_14 = arith.constant dense<0.000000e+00> : vector<8xf32>
    %40 = vector.multi_reduction <add>, %39, %cst_14 [1] : vector<8x8xf32> to vector<8xf32>
    %41 = vector.shape_cast %40 : vector<8xf32> to vector<8x1xf32>
    %42 = tpu.reciprocal %41 {approx = true} : vector<8x1xf32> -> vector<8x1xf32>
    %43 = vector.broadcast %42 : vector<8x1xf32> to vector<8x8xf32>
    %44 = arith.mulf %39, %43 : vector<8x8xf32>
    %45 = arith.truncf %44 : vector<8x8xf32> to vector<8x8xbf16>
    %cst_15 = arith.constant dense<0.000000e+00> : vector<8x8xf32>
    %46 = tpu.matmul %45, %33, %cst_15 {dimension_numbers = #tpu.dot_dimension_numbers<[1], [0], [0], [1], [0, 0, 1, 1], [], []>} : vector<8x8xbf16>, vector<8x8xbf16>, vector<8x8xf32> -> vector<8x8xf32>
    %47 = arith.truncf %46 : vector<8x8xf32> to vector<8x8xbf16>
    %c0_16 = arith.constant 0 : index
    %c8 = arith.constant 8 : index
    %48 = vector.load %arg7[%c0_16, %c8] : memref<8x32xbf16, #tpu.memory_space<vmem>>, vector<8x8xbf16>
    tpu.vector_store %arg7[%c0_16, %c8], %47 {strides = array<i32>} : memref<8x32xbf16, #tpu.memory_space<vmem>>, vector<8x8xbf16>,
    %49 = vector.extract_strided_slice %8 {offsets = [0, 16], sizes = [8, 8], strides = [1, 1]} : vector<8x32xbf16> to vector<8x8xbf16>
    %50 = vector.extract_strided_slice %10 {offsets = [0, 16], sizes = [8, 8], strides = [1, 1]} : vector<8x32xbf16> to vector<8x8xbf16>
    %51 = vector.extract_strided_slice %12 {offsets = [0, 16], sizes = [8, 8], strides = [1, 1]} : vector<8x32xbf16> to vector<8x8xbf16>
    %cst_17 = arith.constant dense<0.000000e+00> : vector<8x8xf32>
    %52 = tpu.matmul %49, %50, %cst_17 {dimension_numbers = #tpu.dot_dimension_numbers<[1], [1], [0], [0], [0, 0, 1, 0], [], []>} : vector<8x8xbf16>, vector<8x8xbf16>, vector<8x8xf32> -> vector<8x8xf32>
    %cst_18 = arith.constant dense<0xFF800000> : vector<8xf32>
    %53 = vector.multi_reduction <maximumf>, %52, %cst_18 [1] : vector<8x8xf32> to vector<8xf32>
    %54 = vector.shape_cast %53 : vector<8xf32> to vector<8x1xf32>
    %55 = vector.broadcast %54 : vector<8x1xf32> to vector<8x8xf32>
    %56 = arith.subf %52, %55 : vector<8x8xf32>
    %57 = math.exp %56 : vector<8x8xf32>
    %cst_19 = arith.constant dense<0.000000e+00> : vector<8xf32>
    %58 = vector.multi_reduction <add>, %57, %cst_19 [1] : vector<8x8xf32> to vector<8xf32>
    %59 = vector.shape_cast %58 : vector<8xf32> to vector<8x1xf32>
    %60 = tpu.reciprocal %59 {approx = true} : vector<8x1xf32> -> vector<8x1xf32>
    %61 = vector.broadcast %60 : vector<8x1xf32> to vector<8x8xf32>
    %62 = arith.mulf %57, %61 : vector<8x8xf32>
    %63 = arith.truncf %62 : vector<8x8xf32> to vector<8x8xbf16>
    %cst_20 = arith.constant dense<0.000000e+00> : vector<8x8xf32>
    %64 = tpu.matmul %63, %51, %cst_20 {dimension_numbers = #tpu.dot_dimension_numbers<[1], [0], [0], [1], [0, 0, 1, 1], [], []>} : vector<8x8xbf16>, vector<8x8xbf16>, vector<8x8xf32> -> vector<8x8xf32>
    %65 = arith.truncf %64 : vector<8x8xf32> to vector<8x8xbf16>
    %c0_21 = arith.constant 0 : index
    %c16 = arith.constant 16 : index
    %66 = vector.load %arg7[%c0_21, %c16] : memref<8x32xbf16, #tpu.memory_space<vmem>>, vector<8x8xbf16>
    tpu.vector_store %arg7[%c0_21, %c16], %65 {strides = array<i32>} : memref<8x32xbf16, #tpu.memory_space<vmem>>, vector<8x8xbf16>,
    %67 = vector.extract_strided_slice %8 {offsets = [0, 24], sizes = [8, 8], strides = [1, 1]} : vector<8x32xbf16> to vector<8x8xbf16>
    %68 = vector.extract_strided_slice %10 {offsets = [0, 24], sizes = [8, 8], strides = [1, 1]} : vector<8x32xbf16> to vector<8x8xbf16>
    %69 = vector.extract_strided_slice %12 {offsets = [0, 24], sizes = [8, 8], strides = [1, 1]} : vector<8x32xbf16> to vector<8x8xbf16>
    %cst_22 = arith.constant dense<0.000000e+00> : vector<8x8xf32>
    %70 = tpu.matmul %67, %68, %cst_22 {dimension_numbers = #tpu.dot_dimension_numbers<[1], [1], [0], [0], [0, 0, 1, 0], [], []>} : vector<8x8xbf16>, vector<8x8xbf16>, vector<8x8xf32> -> vector<8x8xf32>
    %cst_23 = arith.constant dense<0xFF800000> : vector<8xf32>
    %71 = vector.multi_reduction <maximumf>, %70, %cst_23 [1] : vector<8x8xf32> to vector<8xf32>
    %72 = vector.shape_cast %71 : vector<8xf32> to vector<8x1xf32>
    %73 = vector.broadcast %72 : vector<8x1xf32> to vector<8x8xf32>
    %74 = arith.subf %70, %73 : vector<8x8xf32>
    %75 = math.exp %74 : vector<8x8xf32>
    %cst_24 = arith.constant dense<0.000000e+00> : vector<8xf32>
    %76 = vector.multi_reduction <add>, %75, %cst_24 [1] : vector<8x8xf32> to vector<8xf32>
    %77 = vector.shape_cast %76 : vector<8xf32> to vector<8x1xf32>
    %78 = tpu.reciprocal %77 {approx = true} : vector<8x1xf32> -> vector<8x1xf32>
    %79 = vector.broadcast %78 : vector<8x1xf32> to vector<8x8xf32>
    %80 = arith.mulf %75, %79 : vector<8x8xf32>
    %81 = arith.truncf %80 : vector<8x8xf32> to vector<8x8xbf16>
    %cst_25 = arith.constant dense<0.000000e+00> : vector<8x8xf32>
    %82 = tpu.matmul %81, %69, %cst_25 {dimension_numbers = #tpu.dot_dimension_numbers<[1], [0], [0], [1], [0, 0, 1, 1], [], []>} : vector<8x8xbf16>, vector<8x8xbf16>, vector<8x8xf32> -> vector<8x8xf32>
    %83 = arith.truncf %82 : vector<8x8xf32> to vector<8x8xbf16>
    %c0_26 = arith.constant 0 : index
    %c24 = arith.constant 24 : index
    %84 = vector.load %arg7[%c0_26, %c24] : memref<8x32xbf16, #tpu.memory_space<vmem>>, vector<8x8xbf16>
    tpu.vector_store %arg7[%c0_26, %c24], %83 {strides = array<i32>} : memref<8x32xbf16, #tpu.memory_space<vmem>>, vector<8x8xbf16>,
    %c0_27 = arith.constant 0 : index
    %c0_28 = arith.constant 0 : index
    %85 = vector.load %arg7[%c0_27, %c0_28] : memref<8x32xbf16, #tpu.memory_space<vmem>>, vector<8x32xbf16>
    %c0_29 = arith.constant 0 : index
    %c0_30 = arith.constant 0 : index
    %86 = vector.load %arg4[%c0_29, %c0_30] : memref<32x32xbf16, #tpu.memory_space<vmem>>, vector<32x32xbf16>
    %cst_31 = arith.constant dense<0.000000e+00> : vector<8x32xf32>
    %87 = tpu.matmul %85, %86, %cst_31 {dimension_numbers = #tpu.dot_dimension_numbers<[1], [0], [0], [1], [0, 0, 1, 1], [], []>} : vector<8x32xbf16>, vector<32x32xbf16>, vector<8x32xf32> -> vector<8x32xf32>
    %c0_32 = arith.constant 0 : index
    %c0_33 = arith.constant 0 : index
    %88 = vector.load %arg5[%c0_32, %c0_33] : memref<1x32xf32, #tpu.memory_space<vmem>>, vector<1x32xf32>
    %89 = vector.broadcast %88 : vector<1x32xf32> to vector<8x32xf32>
    %90 = arith.addf %87, %89 : vector<8x32xf32>
    %c0_34 = arith.constant 0 : index
    %c0_35 = arith.constant 0 : index
    %c0_36 = arith.constant 0 : index
    %91 = vector.load %arg6[%c0_34, %c0_35, %c0_36] : memref<1x8x32xf32, #tpu.memory_space<vmem>>, vector<1x8x32xf32>
    %92 = vector.shape_cast %91 : vector<1x8x32xf32> to vector<8x32xf32>
    %93 = vector.shape_cast %90 : vector<8x32xf32> to vector<1x8x32xf32>
    tpu.vector_store %arg6[%c0_34, %c0_35, %c0_36], %93 {strides = array<i32>} : memref<1x8x32xf32, #tpu.memory_space<vmem>>, vector<1x8x32xf32>,
    return
  }
  func.func @transform_0(%arg0: i32) -> (i32, i32, i32) {
    %c0_i32 = arith.constant 0 : i32
    %c0_i32_0 = arith.constant 0 : i32
    %c0_i32_1 = arith.constant 0 : i32
    return %arg0, %c0_i32, %c0_i32_0 : i32, i32, i32
  }
  func.func @transform_1(%arg0: i32) -> (i32, i32) {
    %c0_i32 = arith.constant 0 : i32
    %c0_i32_0 = arith.constant 0 : i32
    %c0_i32_1 = arith.constant 0 : i32
    return %c0_i32, %c0_i32_0 : i32, i32
  }
  func.func @transform_2(%arg0: i32) -> (i32, i32) {
    %c0_i32 = arith.constant 0 : i32
    %c0_i32_0 = arith.constant 0 : i32
    %c0_i32_1 = arith.constant 0 : i32
    return %c0_i32, %c0_i32_0 : i32, i32
  }
  func.func @transform_3(%arg0: i32) -> (i32, i32) {
    %c0_i32 = arith.constant 0 : i32
    %c0_i32_0 = arith.constant 0 : i32
    %c0_i32_1 = arith.constant 0 : i32
    return %c0_i32, %c0_i32_0 : i32, i32
  }
  func.func @transform_4(%arg0: i32) -> (i32, i32) {
    %c0_i32 = arith.constant 0 : i32
    %c0_i32_0 = arith.constant 0 : i32
    %c0_i32_1 = arith.constant 0 : i32
    return %c0_i32, %c0_i32_0 : i32, i32
  }
  func.func @transform_5(%arg0: i32) -> (i32, i32, i32) {
    %c0_i32 = arith.constant 0 : i32
    %c0_i32_0 = arith.constant 0 : i32
    %c0_i32_1 = arith.constant 0 : i32
    return %arg0, %c0_i32, %c0_i32_0 : i32, i32, i32
  }
}

</mosaic_0001>

<llo_original>
// kernel: tpu_custom_call.1
$region0: #{tpu_custom_call.1}
  #allocation0 [shape = 'u32[]', space=smem, size = 0x4, offset = 0x4, fixed_abs, tag = 'smem constant byte address 0x4 - core index']
  #allocation1 [shape = 'u32[144,128]{1,0:T(1,128)}', space=vmem, size = 0x12000, scoped, tag = 'internal scratch']
  #allocation2 [shape = 'bf16[8,32]{1,0:T(8,128)(2,1)}', space=vmem, size = 0x800, scoped, tag = 'scratch operand']
  %s0 = inlined_call_operand.hbm [shape: bf16[2,8,32], index: 0, kind: input, shape index: {}]
  %s1 = inlined_call_operand.hbm [shape: bf16[32,96], index: 1, kind: input, shape index: {}]
  %s2 = inlined_call_operand.vmem [shape: f32[1,32], index: 2, kind: input, shape index: {}]
  %s3 = inlined_call_operand.hbm [shape: bf16[32,32], index: 3, kind: input, shape index: {}]
  %s4 = inlined_call_operand.vmem [shape: f32[1,32], index: 4, kind: input, shape index: {}]
  %s5 = inlined_call_operand.hbm [shape: f32[2,8,32], index: 5, kind: output, shape index: {}]
  %s6 = sld [smem:[#allocation0]]
  $region65: #{tpu_custom_call.1} parent=0
    _
  %s8 = ssub.s32 1, %s6
  %s9 = scalar_select 0, %s8, %s6
  $region1: #{tpu_custom_call.1} parent=0
    #allocation3 [shape = 'u8[4096]{0}', space=vmem, size = 0x1000, scoped, tag = 'input window, operand 0']
    #allocation4 [shape = 's32[2]{0}', space=sflag, size = 0x8, scoped, tag = 'scoped memory for tpu_custom_call.1']
    #allocation5 [shape = 's32[2]{0}', space=sflag, size = 0x8, scoped, tag = 'scoped memory for tpu_custom_call.1']
    #allocation6 [shape = 'u8[8192]{0}', space=vmem, size = 0x2000, scoped, tag = 'input window, operand 1, single buffered']
    #allocation7 [shape = 's32[1]{0}', space=sflag, size = 0x4, scoped, tag = 'scoped memory for tpu_custom_call.1']
    #allocation8 [shape = 'u8[8192]{0}', space=vmem, size = 0x2000, scoped, tag = 'input window, operand 3, single buffered']
    #allocation9 [shape = 'u8[8192]{0}', space=vmem, size = 0x2000, scoped, tag = 'output window, operand 0']
    %10 = vsyncpa [#allocation4], 0
    %s11 = scalar_lea.sflag [#allocation4], 1
    %12 = vsyncpa %s11, 0
    %13 = vsyncpa [#allocation7], 0
    %14 = vsyncpa [#allocation5], 0
    %s15 = scalar_lea.sflag [#allocation5], 1
    %16 = vsyncpa %s15, 0
    loop: start=0, step=1, limit=4
    $region2: #{tpu_custom_call.1} parent=1 // loop_pre_header
      _
    $region3: #{tpu_custom_call.1} parent=1 // loop_header
      %s18 = sphi 0, %s22
      %p19 = scmp.ge.s32.totalorder %s18, 4
      %s28 = sphi 0, %s30
      %s31 = sphi 0, %s28
      %s32 = sphi 0, %s31
      %s48 = sphi 0, %s32
      %s52 = sphi 0, %s52
      %s54 = sphi 0, %s52
      %s55 = sphi 0, %s54
      %s69 = sphi 0, %s55
      %s73 = sphi 0, %s73
      %s75 = sphi 0, %s73
      %s76 = sphi 0, %s75
      %s90 = sphi 0, %s76
      %s94 = sphi 0, %s94
      %s96 = sphi 0, %s94
      %s97 = sphi 0, %s96
      %s111 = sphi 0, %s97
      %s115 = sphi 0, %s115
      %s117 = sphi 0, %s115
      %s118 = sphi 0, %s117
      %s132 = sphi 0, %s118
      %s138 = sphi 0, %s140
      %s141 = sphi 0, %s138
      %s142 = sphi 0, %s141
      %s158 = sphi 0, %s142
    $region4: #{tpu_custom_call.1} parent=1 // loop_header_branch
      %21 = sbr.rel (%p19) target = $region8
    $region5: #{tpu_custom_call.1} parent=1 // loop_body
      %s23 = ssub.s32 %s18, 1
      %s24 = ssub.s32 %s18, 2
      %s25 = sadd.s32 %s18, 1
      %s26 = ssub.s32 %s18, %s25
      %p27 = scmp.eq.s32.totalorder %s26, 0
      %s29 = sadd.s32 %s28, 1
      %s30 = scalar_select %p27, %s28, %s29
      %p33 = pneg %p27
      %p34 = scmp.eq.s32.totalorder %s18, 1
      %p35 = por %p33, %p34
      %p36 = scmp.ne.s32.totalorder %s28, %s31
      %p37 = scmp.eq.s32.totalorder %s18, 0
      %p38 = por %p36, %p37
      %p39 = scmp.ne.s32.totalorder %s28, %s31
      %p40 = scmp.eq.s32.totalorder %s23, 1
      %p41 = por %p39, %p40
      %p42 = scmp.ne.s32.totalorder %s31, %s32
      %p43 = scmp.eq.s32.totalorder %s23, 0
      %p44 = por %p42, %p43
      %p45 = scmp.ne.s32.totalorder %s31, %s32
      %p46 = scmp.eq.s32.totalorder %s24, 1
      %p47 = por %p45, %p46
      %p49 = scmp.ne.s32.totalorder %s32, %s48
      %p50 = scmp.eq.s32.totalorder %s24, 0
      %p51 = por %p49, %p50
      %s53 = sadd.s32 %s52, 1
      %p56 = scmp.eq.s32.totalorder %s18, 1
      %p57 = scmp.ne.s32.totalorder %s52, %s54
      %p58 = scmp.eq.s32.totalorder %s18, 0
      %p59 = por %p57, %p58
      %p60 = scmp.ne.s32.totalorder %s52, %s54
      %p61 = scmp.eq.s32.totalorder %s23, 1
      %p62 = por %p60, %p61
      %p63 = scmp.ne.s32.totalorder %s54, %s55
      %p64 = scmp.eq.s32.totalorder %s23, 0
      %p65 = por %p63, %p64
      %p66 = scmp.ne.s32.totalorder %s54, %s55
      %p67 = scmp.eq.s32.totalorder %s24, 1
      %p68 = por %p66, %p67
      %p70 = scmp.ne.s32.totalorder %s55, %s69
      %p71 = scmp.eq.s32.totalorder %s24, 0
      %p72 = por %p70, %p71
      %s74 = sadd.s32 %s73, 1
      %p77 = scmp.eq.s32.totalorder %s18, 1
      %p78 = scmp.ne.s32.totalorder %s73, %s75
      %p79 = scmp.eq.s32.totalorder %s18, 0
      %p80 = por %p78, %p79
      %p81 = scmp.ne.s32.totalorder %s73, %s75
      %p82 = scmp.eq.s32.totalorder %s23, 1
      %p83 = por %p81, %p82
      %p84 = scmp.ne.s32.totalorder %s75, %s76
      %p85 = scmp.eq.s32.totalorder %s23, 0
      %p86 = por %p84, %p85
      %p87 = scmp.ne.s32.totalorder %s75, %s76
      %p88 = scmp.eq.s32.totalorder %s24, 1
      %p89 = por %p87, %p88
      %p91 = scmp.ne.s32.totalorder %s76, %s90
      %p92 = scmp.eq.s32.totalorder %s24, 0
      %p93 = por %p91, %p92
      %s95 = sadd.s32 %s94, 1
      %p98 = scmp.eq.s32.totalorder %s18, 1
      %p99 = scmp.ne.s32.totalorder %s94, %s96
      %p100 = scmp.eq.s32.totalorder %s18, 0
      %p101 = por %p99, %p100
      %p102 = scmp.ne.s32.totalorder %s94, %s96
      %p103 = scmp.eq.s32.totalorder %s23, 1
      %p104 = por %p102, %p103
      %p105 = scmp.ne.s32.totalorder %s96, %s97
      %p106 = scmp.eq.s32.totalorder %s23, 0
      %p107 = por %p105, %p106
      %p108 = scmp.ne.s32.totalorder %s96, %s97
      %p109 = scmp.eq.s32.totalorder %s24, 1
      %p110 = por %p108, %p109
      %p112 = scmp.ne.s32.totalorder %s97, %s111
      %p113 = scmp.eq.s32.totalorder %s24, 0
      %p114 = por %p112, %p113
      %s116 = sadd.s32 %s115, 1
      %p119 = scmp.eq.s32.totalorder %s18, 1
      %p120 = scmp.ne.s32.totalorder %s115, %s117
      %p121 = scmp.eq.s32.totalorder %s18, 0
      %p122 = por %p120, %p121
      %p123 = scmp.ne.s32.totalorder %s115, %s117
      %p124 = scmp.eq.s32.totalorder %s23, 1
      %p125 = por %p123, %p124
      %p126 = scmp.ne.s32.totalorder %s117, %s118
      %p127 = scmp.eq.s32.totalorder %s23, 0
      %p128 = por %p126, %p127
      %p129 = scmp.ne.s32.totalorder %s117, %s118
      %p130 = scmp.eq.s32.totalorder %s24, 1
      %p131 = por %p129, %p130
      %p133 = scmp.ne.s32.totalorder %s118, %s132
      %p134 = scmp.eq.s32.totalorder %s24, 0
      %p135 = por %p133, %p134
      %s136 = ssub.s32 %s18, %s25
      %p137 = scmp.eq.s32.totalorder %s136, 0
      %s139 = sadd.s32 %s138, 1
      %s140 = scalar_select %p137, %s138, %s139
      %p143 = pneg %p137
      %p144 = scmp.eq.s32.totalorder %s18, 1
      %p145 = por %p143, %p144
      %p146 = scmp.ne.s32.totalorder %s138, %s141
      %p147 = scmp.eq.s32.totalorder %s18, 0
      %p148 = por %p146, %p147
      %p149 = scmp.ne.s32.totalorder %s138, %s141
      %p150 = scmp.eq.s32.totalorder %s23, 1
      %p151 = por %p149, %p150
      %p152 = scmp.ne.s32.totalorder %s141, %s142
      %p153 = scmp.eq.s32.totalorder %s23, 0
      %p154 = por %p152, %p153
      %p155 = scmp.ne.s32.totalorder %s141, %s142
      %p156 = scmp.eq.s32.totalorder %s24, 1
      %p157 = por %p155, %p156
      %p159 = scmp.ne.s32.totalorder %s142, %s158
      %p160 = scmp.eq.s32.totalorder %s24, 0
      %p161 = por %p159, %p160
      %p162 = scmp.le.s32.totalorder 1, %s18
      %p163 = scmp.lt.s32.totalorder %s18, 3
      %p164 = pnand %p162, %p163
      %p165 = pneg %p164
      // Predicated region
      $region9: #{tpu_custom_call.1} parent=5 // pred_check
        _
      $region10: #{tpu_custom_call.1} parent=5 // pred_check_branch
        %167 = sbr.rel (%p164) target = $region12
      $region11: #{tpu_custom_call.1} parent=5 // pred_region
        %s168 = ssub.s32 %s18, 1
        // Predicated region
        $region13: #{tpu_custom_call.1} parent=11 // pred_check
          %p169 = pneg %p65
        $region14: #{tpu_custom_call.1} parent=11 // pred_check_branch
          %171 = sbr.rel (%p169) target = $region16
        $region15: #{tpu_custom_call.1} parent=11 // pred_region
          %s173 = ssub.s32 256, 256
          %174 = vsyncadd [#allocation7], %s173
          %s175 = sshll.u32 [#allocation6], 4
          %s176 = int_to_ptr.vmem [resolvable:$true] %s175
          %181 = dma.hbm_to_vmem [thread:$0]  %s1, 256, %s176, [#allocation7], 64, 64, 4
        $region16: #{tpu_custom_call.1} parent=11 // pred_fallthru
          _
        // Predicated region
        $region17: #{tpu_custom_call.1} parent=11 // pred_check
          %p182 = pneg %p86
        $region18: #{tpu_custom_call.1} parent=11 // pred_check_branch
          %184 = sbr.rel (%p182) target = $region20
        $region19: #{tpu_custom_call.1} parent=11 // pred_region
          _
        $region20: #{tpu_custom_call.1} parent=11 // pred_fallthru
          _
        // Predicated region
        $region21: #{tpu_custom_call.1} parent=11 // pred_check
          %p185 = pneg %p107
        $region22: #{tpu_custom_call.1} parent=11 // pred_check_branch
          %187 = sbr.rel (%p185) target = $region24
        $region23: #{tpu_custom_call.1} parent=11 // pred_region
          %s189 = ssub.s32 256, 256
          %190 = vsyncadd [#allocation7], %s189
          %s191 = sshll.u32 [#allocation8], 4
          %s192 = int_to_ptr.vmem [resolvable:$true] %s191
          %197 = dma.hbm_to_vmem [thread:$0]  %s3, 256, %s192, [#allocation7], 64, 64, 4
        $region24: #{tpu_custom_call.1} parent=11 // pred_fallthru
          _
        // Predicated region
        $region25: #{tpu_custom_call.1} parent=11 // pred_check
          %p198 = pneg %p128
        $region26: #{tpu_custom_call.1} parent=11 // pred_check_branch
          %200 = sbr.rel (%p198) target = $region28
        $region27: #{tpu_custom_call.1} parent=11 // pred_region
          _
        $region28: #{tpu_custom_call.1} parent=11 // pred_fallthru
          _
      $region12: #{tpu_custom_call.1} parent=5 // pred_fallthru
        _
      %p201 = scmp.lt.s32.totalorder %s18, 2
      // Predicated region
      $region29: #{tpu_custom_call.1} parent=5 // pred_check
        %p202 = pneg %p201
      $region30: #{tpu_custom_call.1} parent=5 // pred_check_branch
        %204 = sbr.rel (%p202) target = $region32
      $region31: #{tpu_custom_call.1} parent=5 // pred_region
        // Predicated region
        $region33: #{tpu_custom_call.1} parent=31 // pred_check
          %p205 = pneg %p38
        $region34: #{tpu_custom_call.1} parent=31 // pred_check_branch
          %207 = sbr.rel (%p205) target = $region36
        $region35: #{tpu_custom_call.1} parent=31 // pred_region
          %s208 = sand.u32 %s28, 1
          %s209 = scalar_lea.sflag [#allocation4], %s208
          %s210 = sand.u32 %s28, 1
          %s211 = smul.addr %s210, 4
          %s212 = scalar_lea.vmem [#allocation3], %s211
          %s214 = ssub.s32 64, 64
          %215 = vsyncadd %s209, %s214
          %s216 = smul.addr %s18, 64
          %s217 = scalar_lea.hbm %s0, %s216
          %s219 = sshll.u32 %s212, 4
          %s220 = int_to_ptr.vmem [resolvable:$true] %s219
          %222 = dma.hbm_to_vmem [thread:$0]  %s217, 64, %s220, %s209
        $region36: #{tpu_custom_call.1} parent=31 // pred_fallthru
          _
      $region32: #{tpu_custom_call.1} parent=5 // pred_fallthru
        _
      %p223 = scmp.le.s32.totalorder 1, %s18
      %p224 = scmp.lt.s32.totalorder %s18, 3
      %p225 = pnand %p223, %p224
      %p226 = pneg %p225
      // Predicated region
      $region37: #{tpu_custom_call.1} parent=5 // pred_check
        _
      $region38: #{tpu_custom_call.1} parent=5 // pred_check_branch
        %228 = sbr.rel (%p225) target = $region40
      $region39: #{tpu_custom_call.1} parent=5 // pred_region
        %s229 = ssub.s32 %s18, 1
        %s230 = sand.u32 %s31, 1
        %s231 = scalar_lea.sflag [#allocation4], %s230
        %s232 = sand.u32 %s31, 1
        %s233 = smul.addr %s232, 4
        %s234 = scalar_lea.vmem [#allocation3], %s233
        // Predicated region
        $region41: #{tpu_custom_call.1} parent=39 // pred_check
          %p235 = pneg %p44
        $region42: #{tpu_custom_call.1} parent=39 // pred_check_branch
          %237 = sbr.rel (%p235) target = $region44
        $region43: #{tpu_custom_call.1} parent=39 // pred_region
          %238 = dma.done %s231, 64
        $region44: #{tpu_custom_call.1} parent=39 // pred_fallthru
          _
        // Predicated region
        $region45: #{tpu_custom_call.1} parent=39 // pred_check
          %p239 = pneg %p65
        $region46: #{tpu_custom_call.1} parent=39 // pred_check_branch
          %241 = sbr.rel (%p239) target = $region48
        $region47: #{tpu_custom_call.1} parent=39 // pred_region
          %242 = dma.done [#allocation7], 256
        $region48: #{tpu_custom_call.1} parent=39 // pred_fallthru
          _
        // Predicated region
        $region49: #{tpu_custom_call.1} parent=39 // pred_check
          %p243 = pneg %p107
        $region50: #{tpu_custom_call.1} parent=39 // pred_check_branch
          %245 = sbr.rel (%p243) target = $region52
        $region51: #{tpu_custom_call.1} parent=39 // pred_region
          %246 = dma.done [#allocation7], 256
        $region52: #{tpu_custom_call.1} parent=39 // pred_fallthru
          _
        %s247 = sand.u32 %s31, 1
        %s248 = scalar_lea.sflag [#allocation4], %s247
        %s249 = sand.u32 %s31, 1
        %s250 = smul.addr %s249, 4
        %s251 = scalar_lea.vmem [#allocation3], %s250
        %p252 = pneg %p44
        %p253 = pneg %p41
        %p254 = pneg %p65
        %p255 = pneg %p62
        %p256 = pneg %p86
        %p257 = pneg %p83
        %p258 = pneg %p107
        %p259 = pneg %p104
        %p260 = pneg %p128
        %p261 = pneg %p125
        %p262 = pneg %p154
        %p263 = pneg %p151
        %s264 = sand.u32 %s141, 1
        %s265 = scalar_lea.sflag [#allocation5], %s264
        %s266 = sand.u32 %s141, 1
        %s267 = smul.addr %s266, 8
        %s268 = scalar_lea.vmem [#allocation9], %s267
        %v270 = vld [vmem:[%s234] sm:$0xf]
        %v271 = vld [vmem:[#allocation6] sm:$0xf]
        %v272 = vld [vmem:[#allocation6 + $0x4] sm:$0xf]
        %v273 = vld [vmem:[#allocation6 + $0x8] sm:$0xf]
        %v274 = vld [vmem:[#allocation6 + $0xc] sm:$0xf]
        %v279 = vunpack.c.l.b16 %v271
        %v280 = vunpack.c.l.b16 %v272
        %v281 = vunpack.c.l.b16 %v273
        %v282 = vunpack.c.l.b16 %v274
        %v283 = vpack.c.b16 %v280, %v279
        %v284 = vpack.c.b16 %v282, %v281
        %vm287 = vcmask 261120
        %v289 = vsel %vm287, %v270, 0
        %291 = vmatprep.subr.bf16.mxu0 0
        %292 = vmatpush1.bf16.msra.mxu0 %v283
        %293 = vmatprep.subr.bf16.mxu0 0
        %294 = vmatpush1.bf16.msra.mxu0 %v284
        %295 = vmatprep.subr.bf16.mxu0 0
        %296 = vmatpush1.bf16.msra.mxu0 0
        %297 = vmatprep.subr.bf16.mxu0 0
        %298 = vmatpush1.bf16.msra.mxu0 0
        %299 = vmatprep.subr.bf16.mxu0 0
        %300 = vmatpush1.bf16.msra.mxu0 0
        %301 = vmatprep.subr.bf16.mxu0 0
        %302 = vmatpush1.bf16.msra.mxu0 0
        %303 = vmatprep.subr.bf16.mxu0 0
        %304 = vmatpush1.bf16.msra.mxu0 0
        %305 = vmatprep.subr.bf16.mxu0 0
        %306 = vmatpush1.bf16.msra.mxu0 0
        %307 = vmatprep.subr.bf16.mxu0 0
        %308 = vmatpush1.bf16.msra.mxu0 0
        %309 = vmatprep.subr.bf16.mxu0 0
        %310 = vmatpush1.bf16.msra.mxu0 0
        %311 = vmatprep.subr.bf16.mxu0 0
        %312 = vmatpush1.bf16.msra.mxu0 0
        %313 = vmatprep.subr.bf16.mxu0 0
        %314 = vmatpush1.bf16.msra.mxu0 0
        %315 = vmatprep.subr.bf16.mxu0 0
        %316 = vmatpush1.bf16.msra.mxu0 0
        %317 = vmatprep.subr.bf16.mxu0 0
        %318 = vmatpush1.bf16.msra.mxu0 0
        %319 = vmatprep.subr.bf16.mxu0 0
        %320 = vmatpush1.bf16.msra.mxu0 0
        %321 = vmatprep.subr.bf16.mxu0 0
        %322 = vmatpush1.bf16.msra.mxu0 0
        %323 = vmatprep.mubr.bf16.mxu0 0
        %324 = vmatmul.mubr.bf16.gmra.mrb[0].mxu0 %v289
        %v325 = vpop.f32.mrb[0].mxu0
        %v326 = vadd.f32 0.0, %v325
        %v327 = vpop.f32.mrb[0].mxu0
        %v328 = vpop.f32.mrb[0].mxu0
        %v329 = vpop.f32.mrb[0].mxu0
        %330 = vdwg.mxu0
        %v331 = vld [vmem:[%s2] sm:$0x1]
        %v333 = vlaneseq
        %v334 = vshrl.u32 %v333, 7
        %v335 = vsub.s32 0, %v334
        %v336 = vrot.slane %v331, %v335
        %v338 = vadd.f32 %v326, %v336
        %v339 = vpack.c.bf16 %v338, %v338
        %v340 = vpack.c.bf16 %v326, %v326
        %342 = vrot.lane.b32.xlu0 %v340, 96
        %v343 = vpop.permute.xlu0 %342
        %vm344 = vcmask 64512
        %v346 = vsel %vm344, %v339, 0
        %v349 = vsel %vm344, %v343, 0
        %351 = vmatprep.subr.bf16.mxu0 0
        %352 = vmatpush1.bf16.xpose.msra.mxu0 %v349
        %353 = vmatprep.subr.bf16.mxu0 0
        %354 = vmatpush1.bf16.xpose.msra.mxu0 0
        %355 = vmatprep.subr.bf16.mxu0 0
        %356 = vmatpush1.bf16.xpose.msra.mxu0 0
        %357 = vmatprep.subr.bf16.mxu0 0
        %358 = vmatpush1.bf16.xpose.msra.mxu0 0
        %359 = vmatprep.subr.bf16.mxu0 0
        %360 = vmatpush1.bf16.xpose.msra.mxu0 0
        %361 = vmatprep.subr.bf16.mxu0 0
        %362 = vmatpush1.bf16.xpose.msra.mxu0 0
        %363 = vmatprep.subr.bf16.mxu0 0
        %364 = vmatpush1.bf16.xpose.msra.mxu0 0
        %365 = vmatprep.subr.bf16.mxu0 0
        %366 = vmatpush1.bf16.xpose.msra.mxu0 0
        %367 = vmatprep.subr.bf16.mxu0 0
        %368 = vmatpush1.bf16.xpose.msra.mxu0 0
        %369 = vmatprep.subr.bf16.mxu0 0
        %370 = vmatpush1.bf16.xpose.msra.mxu0 0
        %371 = vmatprep.subr.bf16.mxu0 0
        %372 = vmatpush1.bf16.xpose.msra.mxu0 0
        %373 = vmatprep.subr.bf16.mxu0 0
        %374 = vmatpush1.bf16.xpose.msra.mxu0 0
        %375 = vmatprep.subr.bf16.mxu0 0
        %376 = vmatpush1.bf16.xpose.msra.mxu0 0
        %377 = vmatprep.subr.bf16.mxu0 0
        %378 = vmatpush1.bf16.xpose.msra.mxu0 0
        %379 = vmatprep.subr.bf16.mxu0 0
        %380 = vmatpush1.bf16.xpose.msra.mxu0 0
        %381 = vmatprep.subr.bf16.mxu0 0
        %382 = vmatpush1.bf16.xpose.msra.mxu0 0
        %383 = vmatprep.mubr.bf16.mxu0 0
        %384 = vmatmul.mubr.bf16.gmra.mrb[0].mxu0 %v346
        %v385 = vpop.f32.mrb[0].mxu0
        %v386 = vadd.f32 0.0, %v385
        %v387 = vpop.f32.mrb[0].mxu0
        %v388 = vpop.f32.mrb[0].mxu0
        %v389 = vpop.f32.mrb[0].mxu0
        %390 = vdwg.mxu0
        %v391 = vsel %vm344, %v386, -inf
        %392 = vmax.xlane.f32.xlu0 %v391
        %v393 = vpop.xlane.xlu0 %392
        %v394 = vsub.f32 %v386, %v393
        %v395 = vmul.f32 %v394, 1.442695
        %v396 = vpow.pop %v395
        %v397 = vsel %vm344, %v396, 0.0
        %398 = vadd.xlane.f32.xlu0 %v397
        %v399 = vpop.xlane.xlu0 %398
        %v400 = vrcp.pop %v399
        %v401 = vmul.f32 %v396, %v400
        %v402 = vpack.c.bf16 %v401, %v401
        %403 = vrot.lane.b32.xlu0 %v340, 64
        %v404 = vpop.permute.xlu0 %403
        %v406 = vsel %vm344, %v402, 0
        %vm408 = vcmask 1043456
        %v410 = vsel %vm408, %v404, 0
        %412 = vmatprep.subr.bf16.mxu0 0
        %413 = vmatpush1.bf16.msra.mxu0 %v410
        %414 = vmatprep.subr.bf16.mxu0 0
        %415 = vmatpush1.bf16.msra.mxu0 0
        %416 = vmatprep.subr.bf16.mxu0 0
        %417 = vmatpush1.bf16.msra.mxu0 0
        %418 = vmatprep.subr.bf16.mxu0 0
        %419 = vmatpush1.bf16.msra.mxu0 0
        %420 = vmatprep.subr.bf16.mxu0 0
        %421 = vmatpush1.bf16.msra.mxu0 0
        %422 = vmatprep.subr.bf16.mxu0 0
        %423 = vmatpush1.bf16.msra.mxu0 0
        %424 = vmatprep.subr.bf16.mxu0 0
        %425 = vmatpush1.bf16.msra.mxu0 0
        %426 = vmatprep.subr.bf16.mxu0 0
        %427 = vmatpush1.bf16.msra.mxu0 0
        %428 = vmatprep.subr.bf16.mxu0 0
        %429 = vmatpush1.bf16.msra.mxu0 0
        %430 = vmatprep.subr.bf16.mxu0 0
        %431 = vmatpush1.bf16.msra.mxu0 0
        %432 = vmatprep.subr.bf16.mxu0 0
        %433 = vmatpush1.bf16.msra.mxu0 0
        %434 = vmatprep.subr.bf16.mxu0 0
        %435 = vmatpush1.bf16.msra.mxu0 0
        %436 = vmatprep.subr.bf16.mxu0 0
        %437 = vmatpush1.bf16.msra.mxu0 0
        %438 = vmatprep.subr.bf16.mxu0 0
        %439 = vmatpush1.bf16.msra.mxu0 0
        %440 = vmatprep.subr.bf16.mxu0 0
        %441 = vmatpush1.bf16.msra.mxu0 0
        %442 = vmatprep.subr.bf16.mxu0 0
        %443 = vmatpush1.bf16.msra.mxu0 0
        %444 = vmatprep.mubr.bf16.mxu0 0
        %445 = vmatmul.mubr.bf16.gmra.mrb[0].mxu0 %v406
        %v446 = vpop.f32.mrb[0].mxu0
        %v447 = vadd.f32 0.0, %v446
        %v448 = vpop.f32.mrb[0].mxu0
        %v449 = vpop.f32.mrb[0].mxu0
        %v450 = vpop.f32.mrb[0].mxu0
        %451 = vdwg.mxu0
        %v452 = vpack.c.bf16 %v447, %v447
        %vm453 = vcmask 60416
        %454 = vst.msk [vmem:[#allocation2] sm:$0xf] %vm453, %v452
        %456 = vrot.lane.b32.xlu0 %v339, 120
        %v457 = vpop.permute.xlu0 %456
        %458 = vrot.lane.b32.xlu0 %v340, 88
        %v459 = vpop.permute.xlu0 %458
        %v461 = vsel %vm344, %v457, 0
        %v464 = vsel %vm344, %v459, 0
        %466 = vmatprep.subr.bf16.mxu0 0
        %467 = vmatpush1.bf16.xpose.msra.mxu0 %v464
        %468 = vmatprep.subr.bf16.mxu0 0
        %469 = vmatpush1.bf16.xpose.msra.mxu0 0
        %470 = vmatprep.subr.bf16.mxu0 0
        %471 = vmatpush1.bf16.xpose.msra.mxu0 0
        %472 = vmatprep.subr.bf16.mxu0 0
        %473 = vmatpush1.bf16.xpose.msra.mxu0 0
        %474 = vmatprep.subr.bf16.mxu0 0
        %475 = vmatpush1.bf16.xpose.msra.mxu0 0
        %476 = vmatprep.subr.bf16.mxu0 0
        %477 = vmatpush1.bf16.xpose.msra.mxu0 0
        %478 = vmatprep.subr.bf16.mxu0 0
        %479 = vmatpush1.bf16.xpose.msra.mxu0 0
        %480 = vmatprep.subr.bf16.mxu0 0
        %481 = vmatpush1.bf16.xpose.msra.mxu0 0
        %482 = vmatprep.subr.bf16.mxu0 0
        %483 = vmatpush1.bf16.xpose.msra.mxu0 0
        %484 = vmatprep.subr.bf16.mxu0 0
        %485 = vmatpush1.bf16.xpose.msra.mxu0 0
        %486 = vmatprep.subr.bf16.mxu0 0
        %487 = vmatpush1.bf16.xpose.msra.mxu0 0
        %488 = vmatprep.subr.bf16.mxu0 0
        %489 = vmatpush1.bf16.xpose.msra.mxu0 0
        %490 = vmatprep.subr.bf16.mxu0 0
        %491 = vmatpush1.bf16.xpose.msra.mxu0 0
        %492 = vmatprep.subr.bf16.mxu0 0
        %493 = vmatpush1.bf16.xpose.msra.mxu0 0
        %494 = vmatprep.subr.bf16.mxu0 0
        %495 = vmatpush1.bf16.xpose.msra.mxu0 0
        %496 = vmatprep.subr.bf16.mxu0 0
        %497 = vmatpush1.bf16.xpose.msra.mxu0 0
        %498 = vmatprep.mubr.bf16.mxu0 0
        %499 = vmatmul.mubr.bf16.gmra.mrb[0].mxu0 %v461
        %v500 = vpop.f32.mrb[0].mxu0
        %v501 = vadd.f32 0.0, %v500
        %v502 = vpop.f32.mrb[0].mxu0
        %v503 = vpop.f32.mrb[0].mxu0
        %v504 = vpop.f32.mrb[0].mxu0
        %505 = vdwg.mxu0
        %v506 = vsel %vm344, %v501, -inf
        %507 = vmax.xlane.f32.xlu0 %v506
        %v508 = vpop.xlane.xlu0 %507
        %v509 = vsub.f32 %v501, %v508
        %v510 = vmul.f32 %v509, 1.442695
        %v511 = vpow.pop %v510
        %v512 = vsel %vm344, %v511, 0.0
        %513 = vadd.xlane.f32.xlu0 %v512
        %v514 = vpop.xlane.xlu0 %513
        %v515 = vrcp.pop %v514
        %v516 = vmul.f32 %v511, %v515
        %v517 = vpack.c.bf16 %v516, %v516
        %518 = vrot.lane.b32.xlu0 %v340, 56
        %v519 = vpop.permute.xlu0 %518
        %v521 = vsel %vm344, %v517, 0
        %v524 = vsel %vm408, %v519, 0
        %526 = vmatprep.subr.bf16.mxu0 0
        %527 = vmatpush1.bf16.msra.mxu0 %v524
        %528 = vmatprep.subr.bf16.mxu0 0
        %529 = vmatpush1.bf16.msra.mxu0 0
        %530 = vmatprep.subr.bf16.mxu0 0
        %531 = vmatpush1.bf16.msra.mxu0 0
        %532 = vmatprep.subr.bf16.mxu0 0
        %533 = vmatpush1.bf16.msra.mxu0 0
        %534 = vmatprep.subr.bf16.mxu0 0
        %535 = vmatpush1.bf16.msra.mxu0 0
        %536 = vmatprep.subr.bf16.mxu0 0
        %537 = vmatpush1.bf16.msra.mxu0 0
        %538 = vmatprep.subr.bf16.mxu0 0
        %539 = vmatpush1.bf16.msra.mxu0 0
        %540 = vmatprep.subr.bf16.mxu0 0
        %541 = vmatpush1.bf16.msra.mxu0 0
        %542 = vmatprep.subr.bf16.mxu0 0
        %543 = vmatpush1.bf16.msra.mxu0 0
        %544 = vmatprep.subr.bf16.mxu0 0
        %545 = vmatpush1.bf16.msra.mxu0 0
        %546 = vmatprep.subr.bf16.mxu0 0
        %547 = vmatpush1.bf16.msra.mxu0 0
        %548 = vmatprep.subr.bf16.mxu0 0
        %549 = vmatpush1.bf16.msra.mxu0 0
        %550 = vmatprep.subr.bf16.mxu0 0
        %551 = vmatpush1.bf16.msra.mxu0 0
        %552 = vmatprep.subr.bf16.mxu0 0
        %553 = vmatpush1.bf16.msra.mxu0 0
        %554 = vmatprep.subr.bf16.mxu0 0
        %555 = vmatpush1.bf16.msra.mxu0 0
        %556 = vmatprep.subr.bf16.mxu0 0
        %557 = vmatpush1.bf16.msra.mxu0 0
        %558 = vmatprep.mubr.bf16.mxu0 0
        %559 = vmatmul.mubr.bf16.gmra.mrb[0].mxu0 %v521
        %v560 = vpop.f32.mrb[0].mxu0
        %v561 = vadd.f32 0.0, %v560
        %v562 = vpop.f32.mrb[0].mxu0
        %v563 = vpop.f32.mrb[0].mxu0
        %v564 = vpop.f32.mrb[0].mxu0
        %565 = vdwg.mxu0
        %v566 = vpack.c.bf16 %v561, %v561
        %v568 = vunpack.c.l.b16 %v566
        %v569 = vpack.c.b16 %v568, %v568
        %570 = vrot.lane.b32.xlu0 %v569, 8
        %v571 = vpop.permute.xlu0 %570
        %vm573 = vcmask 126016
        %574 = vst.msk [vmem:[#allocation2] sm:$0xf] %vm573, %v571
        %575 = vrot.lane.b32.xlu0 %v339, 112
        %v576 = vpop.permute.xlu0 %575
        %577 = vrot.lane.b32.xlu0 %v340, 80
        %v578 = vpop.permute.xlu0 %577
        %v580 = vsel %vm344, %v576, 0
        %v583 = vsel %vm344, %v578, 0
        %585 = vmatprep.subr.bf16.mxu0 0
        %586 = vmatpush1.bf16.xpose.msra.mxu0 %v583
        %587 = vmatprep.subr.bf16.mxu0 0
        %588 = vmatpush1.bf16.xpose.msra.mxu0 0
        %589 = vmatprep.subr.bf16.mxu0 0
        %590 = vmatpush1.bf16.xpose.msra.mxu0 0
        %591 = vmatprep.subr.bf16.mxu0 0
        %592 = vmatpush1.bf16.xpose.msra.mxu0 0
        %593 = vmatprep.subr.bf16.mxu0 0
        %594 = vmatpush1.bf16.xpose.msra.mxu0 0
        %595 = vmatprep.subr.bf16.mxu0 0
        %596 = vmatpush1.bf16.xpose.msra.mxu0 0
        %597 = vmatprep.subr.bf16.mxu0 0
        %598 = vmatpush1.bf16.xpose.msra.mxu0 0
        %599 = vmatprep.subr.bf16.mxu0 0
        %600 = vmatpush1.bf16.xpose.msra.mxu0 0
        %601 = vmatprep.subr.bf16.mxu0 0
        %602 = vmatpush1.bf16.xpose.msra.mxu0 0
        %603 = vmatprep.subr.bf16.mxu0 0
        %604 = vmatpush1.bf16.xpose.msra.mxu0 0
        %605 = vmatprep.subr.bf16.mxu0 0
        %606 = vmatpush1.bf16.xpose.msra.mxu0 0
        %607 = vmatprep.subr.bf16.mxu0 0
        %608 = vmatpush1.bf16.xpose.msra.mxu0 0
        %609 = vmatprep.subr.bf16.mxu0 0
        %610 = vmatpush1.bf16.xpose.msra.mxu0 0
        %611 = vmatprep.subr.bf16.mxu0 0
        %612 = vmatpush1.bf16.xpose.msra.mxu0 0
        %613 = vmatprep.subr.bf16.mxu0 0
        %614 = vmatpush1.bf16.xpose.msra.mxu0 0
        %615 = vmatprep.subr.bf16.mxu0 0
        %616 = vmatpush1.bf16.xpose.msra.mxu0 0
        %617 = vmatprep.mubr.bf16.mxu0 0
        %618 = vmatmul.mubr.bf16.gmra.mrb[0].mxu0 %v580
        %v619 = vpop.f32.mrb[0].mxu0
        %v620 = vadd.f32 0.0, %v619
        %v621 = vpop.f32.mrb[0].mxu0
        %v622 = vpop.f32.mrb[0].mxu0
        %v623 = vpop.f32.mrb[0].mxu0
        %624 = vdwg.mxu0
        %v625 = vsel %vm344, %v620, -inf
        %626 = vmax.xlane.f32.xlu0 %v625
        %v627 = vpop.xlane.xlu0 %626
        %v628 = vsub.f32 %v620, %v627
        %v629 = vmul.f32 %v628, 1.442695
        %v630 = vpow.pop %v629
        %v631 = vsel %vm344, %v630, 0.0
        %632 = vadd.xlane.f32.xlu0 %v631
        %v633 = vpop.xlane.xlu0 %632
        %v634 = vrcp.pop %v633
        %v635 = vmul.f32 %v630, %v634
        %v636 = vpack.c.bf16 %v635, %v635
        %637 = vrot.lane.b32.xlu0 %v340, 48
        %v638 = vpop.permute.xlu0 %637
        %v640 = vsel %vm344, %v636, 0
        %v643 = vsel %vm408, %v638, 0
        %645 = vmatprep.subr.bf16.mxu0 0
        %646 = vmatpush1.bf16.msra.mxu0 %v643
        %647 = vmatprep.subr.bf16.mxu0 0
        %648 = vmatpush1.bf16.msra.mxu0 0
        %649 = vmatprep.subr.bf16.mxu0 0
        %650 = vmatpush1.bf16.msra.mxu0 0
        %651 = vmatprep.subr.bf16.mxu0 0
        %652 = vmatpush1.bf16.msra.mxu0 0
        %653 = vmatprep.subr.bf16.mxu0 0
        %654 = vmatpush1.bf16.msra.mxu0 0
        %655 = vmatprep.subr.bf16.mxu0 0
        %656 = vmatpush1.bf16.msra.mxu0 0
        %657 = vmatprep.subr.bf16.mxu0 0
        %658 = vmatpush1.bf16.msra.mxu0 0
        %659 = vmatprep.subr.bf16.mxu0 0
        %660 = vmatpush1.bf16.msra.mxu0 0
        %661 = vmatprep.subr.bf16.mxu0 0
        %662 = vmatpush1.bf16.msra.mxu0 0
        %663 = vmatprep.subr.bf16.mxu0 0
        %664 = vmatpush1.bf16.msra.mxu0 0
        %665 = vmatprep.subr.bf16.mxu0 0
        %666 = vmatpush1.bf16.msra.mxu0 0
        %667 = vmatprep.subr.bf16.mxu0 0
        %668 = vmatpush1.bf16.msra.mxu0 0
        %669 = vmatprep.subr.bf16.mxu0 0
        %670 = vmatpush1.bf16.msra.mxu0 0
        %671 = vmatprep.subr.bf16.mxu0 0
        %672 = vmatpush1.bf16.msra.mxu0 0
        %673 = vmatprep.subr.bf16.mxu0 0
        %674 = vmatpush1.bf16.msra.mxu0 0
        %675 = vmatprep.subr.bf16.mxu0 0
        %676 = vmatpush1.bf16.msra.mxu0 0
        %677 = vmatprep.mubr.bf16.mxu0 0
        %678 = vmatmul.mubr.bf16.gmra.mrb[0].mxu0 %v640
        %v679 = vpop.f32.mrb[0].mxu0
        %v680 = vadd.f32 0.0, %v679
        %v681 = vpop.f32.mrb[0].mxu0
        %v682 = vpop.f32.mrb[0].mxu0
        %v683 = vpop.f32.mrb[0].mxu0
        %684 = vdwg.mxu0
        %v685 = vpack.c.bf16 %v680, %v680
        %v687 = vunpack.c.l.b16 %v685
        %v688 = vpack.c.b16 %v687, %v687
        %689 = vrot.lane.b32.xlu0 %v688, 16
        %v690 = vpop.permute.xlu0 %689
        %vm692 = vcmask 191616
        %693 = vst.msk [vmem:[#allocation2] sm:$0xf] %vm692, %v690
        %694 = vrot.lane.b32.xlu0 %v339, 104
        %v695 = vpop.permute.xlu0 %694
        %696 = vrot.lane.b32.xlu0 %v340, 72
        %v697 = vpop.permute.xlu0 %696
        %v699 = vsel %vm344, %v695, 0
        %v702 = vsel %vm344, %v697, 0
        %704 = vmatprep.subr.bf16.mxu0 0
        %705 = vmatpush1.bf16.xpose.msra.mxu0 %v702
        %706 = vmatprep.subr.bf16.mxu0 0
        %707 = vmatpush1.bf16.xpose.msra.mxu0 0
        %708 = vmatprep.subr.bf16.mxu0 0
        %709 = vmatpush1.bf16.xpose.msra.mxu0 0
        %710 = vmatprep.subr.bf16.mxu0 0
        %711 = vmatpush1.bf16.xpose.msra.mxu0 0
        %712 = vmatprep.subr.bf16.mxu0 0
        %713 = vmatpush1.bf16.xpose.msra.mxu0 0
        %714 = vmatprep.subr.bf16.mxu0 0
        %715 = vmatpush1.bf16.xpose.msra.mxu0 0
        %716 = vmatprep.subr.bf16.mxu0 0
        %717 = vmatpush1.bf16.xpose.msra.mxu0 0
        %718 = vmatprep.subr.bf16.mxu0 0
        %719 = vmatpush1.bf16.xpose.msra.mxu0 0
        %720 = vmatprep.subr.bf16.mxu0 0
        %721 = vmatpush1.bf16.xpose.msra.mxu0 0
        %722 = vmatprep.subr.bf16.mxu0 0
        %723 = vmatpush1.bf16.xpose.msra.mxu0 0
        %724 = vmatprep.subr.bf16.mxu0 0
        %725 = vmatpush1.bf16.xpose.msra.mxu0 0
        %726 = vmatprep.subr.bf16.mxu0 0
        %727 = vmatpush1.bf16.xpose.msra.mxu0 0
        %728 = vmatprep.subr.bf16.mxu0 0
        %729 = vmatpush1.bf16.xpose.msra.mxu0 0
        %730 = vmatprep.subr.bf16.mxu0 0
        %731 = vmatpush1.bf16.xpose.msra.mxu0 0
        %732 = vmatprep.subr.bf16.mxu0 0
        %733 = vmatpush1.bf16.xpose.msra.mxu0 0
        %734 = vmatprep.subr.bf16.mxu0 0
        %735 = vmatpush1.bf16.xpose.msra.mxu0 0
        %736 = vmatprep.mubr.bf16.mxu0 0
        %737 = vmatmul.mubr.bf16.gmra.mrb[0].mxu0 %v699
        %v738 = vpop.f32.mrb[0].mxu0
        %v739 = vadd.f32 0.0, %v738
        %v740 = vpop.f32.mrb[0].mxu0
        %v741 = vpop.f32.mrb[0].mxu0
        %v742 = vpop.f32.mrb[0].mxu0
        %743 = vdwg.mxu0
        %v744 = vsel %vm344, %v739, -inf
        %745 = vmax.xlane.f32.xlu0 %v744
        %v746 = vpop.xlane.xlu0 %745
        %v747 = vsub.f32 %v739, %v746
        %v748 = vmul.f32 %v747, 1.442695
        %v749 = vpow.pop %v748
        %v750 = vsel %vm344, %v749, 0.0
        %751 = vadd.xlane.f32.xlu0 %v750
        %v752 = vpop.xlane.xlu0 %751
        %v753 = vrcp.pop %v752
        %v754 = vmul.f32 %v749, %v753
        %v755 = vpack.c.bf16 %v754, %v754
        %756 = vrot.lane.b32.xlu0 %v340, 40
        %v757 = vpop.permute.xlu0 %756
        %v759 = vsel %vm344, %v755, 0
        %v762 = vsel %vm408, %v757, 0
        %764 = vmatprep.subr.bf16.mxu0 0
        %765 = vmatpush1.bf16.msra.mxu0 %v762
        %766 = vmatprep.subr.bf16.mxu0 0
        %767 = vmatpush1.bf16.msra.mxu0 0
        %768 = vmatprep.subr.bf16.mxu0 0
        %769 = vmatpush1.bf16.msra.mxu0 0
        %770 = vmatprep.subr.bf16.mxu0 0
        %771 = vmatpush1.bf16.msra.mxu0 0
        %772 = vmatprep.subr.bf16.mxu0 0
        %773 = vmatpush1.bf16.msra.mxu0 0
        %774 = vmatprep.subr.bf16.mxu0 0
        %775 = vmatpush1.bf16.msra.mxu0 0
        %776 = vmatprep.subr.bf16.mxu0 0
        %777 = vmatpush1.bf16.msra.mxu0 0
        %778 = vmatprep.subr.bf16.mxu0 0
        %779 = vmatpush1.bf16.msra.mxu0 0
        %780 = vmatprep.subr.bf16.mxu0 0
        %781 = vmatpush1.bf16.msra.mxu0 0
        %782 = vmatprep.subr.bf16.mxu0 0
        %783 = vmatpush1.bf16.msra.mxu0 0
        %784 = vmatprep.subr.bf16.mxu0 0
        %785 = vmatpush1.bf16.msra.mxu0 0
        %786 = vmatprep.subr.bf16.mxu0 0
        %787 = vmatpush1.bf16.msra.mxu0 0
        %788 = vmatprep.subr.bf16.mxu0 0
        %789 = vmatpush1.bf16.msra.mxu0 0
        %790 = vmatprep.subr.bf16.mxu0 0
        %791 = vmatpush1.bf16.msra.mxu0 0
        %792 = vmatprep.subr.bf16.mxu0 0
        %793 = vmatpush1.bf16.msra.mxu0 0
        %794 = vmatprep.subr.bf16.mxu0 0
        %795 = vmatpush1.bf16.msra.mxu0 0
        %796 = vmatprep.mubr.bf16.mxu0 0
        %797 = vmatmul.mubr.bf16.gmra.mrb[0].mxu0 %v759
        %v798 = vpop.f32.mrb[0].mxu0
        %v799 = vadd.f32 0.0, %v798
        %v800 = vpop.f32.mrb[0].mxu0
        %v801 = vpop.f32.mrb[0].mxu0
        %v802 = vpop.f32.mrb[0].mxu0
        %803 = vdwg.mxu0
        %v804 = vpack.c.bf16 %v799, %v799
        %v806 = vunpack.c.l.b16 %v804
        %v807 = vpack.c.b16 %v806, %v806
        %808 = vrot.lane.b32.xlu0 %v807, 24
        %v809 = vpop.permute.xlu0 %808
        %vm811 = vcmask 257216
        %812 = vst.msk [vmem:[#allocation2] sm:$0xf] %vm811, %v809
        %v813 = vld [vmem:[#allocation2] sm:$0xf]
        %v814 = vld [vmem:[#allocation8] sm:$0xf]
        %v815 = vld [vmem:[#allocation8 + $0x4] sm:$0xf]
        %v816 = vld [vmem:[#allocation8 + $0x8] sm:$0xf]
        %v817 = vld [vmem:[#allocation8 + $0xc] sm:$0xf]
        %v818 = vld [vmem:[%s4] sm:$0x1]
        %v820 = vlaneseq
        %v821 = vshrl.u32 %v820, 7
        %v822 = vsub.s32 0, %v821
        %v823 = vrot.slane %v818, %v822
        %v829 = vunpack.c.l.b16 %v814
        %v830 = vunpack.c.l.b16 %v815
        %v831 = vunpack.c.l.b16 %v816
        %v832 = vunpack.c.l.b16 %v817
        %v833 = vpack.c.b16 %v830, %v829
        %v834 = vpack.c.b16 %v832, %v831
        %v838 = vsel %vm287, %v813, 0
        %840 = vmatprep.subr.bf16.mxu0 0
        %841 = vmatpush1.bf16.msra.mxu0 %v833
        %842 = vmatprep.subr.bf16.mxu0 0
        %843 = vmatpush1.bf16.msra.mxu0 %v834
        %844 = vmatprep.subr.bf16.mxu0 0
        %845 = vmatpush1.bf16.msra.mxu0 0
        %846 = vmatprep.subr.bf16.mxu0 0
        %847 = vmatpush1.bf16.msra.mxu0 0
        %848 = vmatprep.subr.bf16.mxu0 0
        %849 = vmatpush1.bf16.msra.mxu0 0
        %850 = vmatprep.subr.bf16.mxu0 0
        %851 = vmatpush1.bf16.msra.mxu0 0
        %852 = vmatprep.subr.bf16.mxu0 0
        %853 = vmatpush1.bf16.msra.mxu0 0
        %854 = vmatprep.subr.bf16.mxu0 0
        %855 = vmatpush1.bf16.msra.mxu0 0
        %856 = vmatprep.subr.bf16.mxu0 0
        %857 = vmatpush1.bf16.msra.mxu0 0
        %858 = vmatprep.subr.bf16.mxu0 0
        %859 = vmatpush1.bf16.msra.mxu0 0
        %860 = vmatprep.subr.bf16.mxu0 0
        %861 = vmatpush1.bf16.msra.mxu0 0
        %862 = vmatprep.subr.bf16.mxu0 0
        %863 = vmatpush1.bf16.msra.mxu0 0
        %864 = vmatprep.subr.bf16.mxu0 0
        %865 = vmatpush1.bf16.msra.mxu0 0
        %866 = vmatprep.subr.bf16.mxu0 0
        %867 = vmatpush1.bf16.msra.mxu0 0
        %868 = vmatprep.subr.bf16.mxu0 0
        %869 = vmatpush1.bf16.msra.mxu0 0
        %870 = vmatprep.subr.bf16.mxu0 0
        %871 = vmatpush1.bf16.msra.mxu0 0
        %872 = vmatprep.mubr.bf16.mxu0 0
        %873 = vmatmul.mubr.bf16.gmra.mrb[0].mxu0 %v838
        %v874 = vpop.f32.mrb[0].mxu0
        %v875 = vadd.f32 %v823, %v874
        %v876 = vpop.f32.mrb[0].mxu0
        %v877 = vpop.f32.mrb[0].mxu0
        %v878 = vpop.f32.mrb[0].mxu0
        %879 = vdwg.mxu0
        %880 = vst.msk [vmem:[%s268] sm:$0xff] %vm287, %v875
        %s881 = sand.u32 %s141, 1
        %s882 = scalar_lea.sflag [#allocation5], %s881
        %s883 = sand.u32 %s141, 1
        %s884 = smul.addr %s883, 8
        %s885 = scalar_lea.vmem [#allocation9], %s884
        // Predicated region
        $region53: #{tpu_custom_call.1} parent=39 // pred_check
          %p886 = pneg %p151
        $region54: #{tpu_custom_call.1} parent=39 // pred_check_branch
          %888 = sbr.rel (%p886) target = $region56
        $region55: #{tpu_custom_call.1} parent=39 // pred_region
          %s890 = ssub.s32 128, 128
          %891 = vsyncadd %s882, %s890
          %s892 = smul.addr %s23, 128
          %s893 = scalar_lea.hbm %s5, %s892
          %s895 = sshll.u32 %s885, 4
          %s896 = int_to_ptr.vmem [resolvable:$true] %s895
          %898 = dma.vmem_to_hbm [thread:$0]  %s896, 128, %s893, %s882
        $region56: #{tpu_custom_call.1} parent=39 // pred_fallthru
          _
      $region40: #{tpu_custom_call.1} parent=5 // pred_fallthru
        _
      %p899 = scmp.le.s32.totalorder 2, %s18
      // Predicated region
      $region57: #{tpu_custom_call.1} parent=5 // pred_check
        %p900 = pneg %p899
      $region58: #{tpu_custom_call.1} parent=5 // pred_check_branch
        %902 = sbr.rel (%p900) target = $region60
      $region59: #{tpu_custom_call.1} parent=5 // pred_region
        %s903 = ssub.s32 %s18, 2
        // Predicated region
        $region61: #{tpu_custom_call.1} parent=59 // pred_check
          %p904 = pneg %p157
        $region62: #{tpu_custom_call.1} parent=59 // pred_check_branch
          %906 = sbr.rel (%p904) target = $region64
        $region63: #{tpu_custom_call.1} parent=59 // pred_region
          %s907 = sand.u32 %s142, 1
          %s908 = scalar_lea.sflag [#allocation5], %s907
          %s909 = sand.u32 %s142, 1
          %s910 = smul.addr %s909, 8
          %s911 = scalar_lea.vmem [#allocation9], %s910
          %912 = dma.done %s908, 128
        $region64: #{tpu_custom_call.1} parent=59 // pred_fallthru
          _
      $region60: #{tpu_custom_call.1} parent=5 // pred_fallthru
        _
    $region6: #{tpu_custom_call.1} parent=1 // loop_footer
      %s22 = sadd.s32 1, %s18
    $region7: #{tpu_custom_call.1} parent=1 // loop_footer_branch
      %17 = sbr.rel target = $region3
    $region8: #{tpu_custom_call.1} parent=1 // loop_exit
      _
    %913 = vsyncpa [#allocation4], 1
    %s914 = scalar_lea.sflag [#allocation4], 1
    %915 = vsyncpa %s914, 1
    %916 = vsyncpa [#allocation7], 1
    %917 = vsyncpa [#allocation5], 1
    %s918 = scalar_lea.sflag [#allocation5], 1
    %919 = vsyncpa %s918, 1

</llo_original>
